<compile_context>
chip_gen: v6e
topology: v6e:2x2x1
jax: 0.10.0
libtpu: 0.0.40
codegen_flags: <defaults>
</compile_context>

<pallas_src>
import jax
import jax.numpy as jnp
from jax.experimental import pallas as pl
from jax.experimental.pallas import tpu as pltpu

_LANES = 128  # lane width: pad the output/N dimension to this for lane-dense stores


def _round_up(x, m):
    return ((x + m - 1) // m) * m


def _policy_mlp_kernel(x_ref, w1_ref, w2_ref, bias_ref, mean_ref):
    # x_ref:    (TB, dim_state)
    # w1_ref:   (dim_state, dim_hidden)
    # w2_ref:   (dim_hidden, N_PAD)        (zero-padded beyond dim_action)
    # bias_ref: (2, BW)  row 0 = b1 (padded to BW), row 1 = b2 (padded to BW)
    # mean_ref: (TB, N_PAD)                lane-dense output slab
    dim_hidden = w1_ref.shape[1]
    n_pad = w2_ref.shape[1]

    x = x_ref[...]                                                     # (TB, dim_state)
    h = jnp.dot(x, w1_ref[...], preferred_element_type=jnp.float32)    # (TB, dim_hidden)
    h = h + bias_ref[0:1, 0:dim_hidden]                                # b1 broadcast
    h = jnp.maximum(h, 0.0)                                            # relu (f32 on VPU)
    m = jnp.dot(h, w2_ref[...], preferred_element_type=jnp.float32)    # (TB, N_PAD)
    m = m + bias_ref[1:2, 0:n_pad]                                     # padded b2 broadcast
    mean_ref[...] = m.astype(mean_ref.dtype)


def policy_network_forward(state, params):
    """Returns (mean, std) — the parameters of Normal(mean, std) from the gaussian head."""
    w1, b1, w2, b2, log_std = params
    B, dim_state = state.shape
    dim_hidden = w1.shape[1]
    dim_action = w2.shape[1]
    n_pad = _round_up(dim_action, _LANES)          # lane-dense output width
    bias_w = max(dim_hidden, n_pad)                # packed-bias tile width

    # --- wrapper-side (one-time, state-independent) parameter packing ---
    w2p = jnp.zeros((dim_hidden, n_pad), jnp.float32).at[:, :dim_action].set(
        w2.astype(jnp.float32))
    bias_pack = jnp.zeros((2, bias_w), jnp.float32)
    bias_pack = bias_pack.at[0, :dim_hidden].set(b1.reshape(-1).astype(jnp.float32))
    bias_pack = bias_pack.at[1, :dim_action].set(b2.reshape(-1).astype(jnp.float32))

    # --- batch tiling: weights resident, state/mean streamed per batch tile ---
    TB = min(_round_up(B, 8), 1024)                # << 64 MiB VMEM per block (v7x-safe)
    B_pad = _round_up(B, TB)
    x = state.astype(jnp.float32)
    if B_pad != B:
        x = jnp.pad(x, ((0, B_pad - B), (0, 0)))
    grid = (B_pad // TB,)

    flops = 2 * B_pad * (dim_state * dim_hidden + dim_hidden * n_pad)
    bytes_accessed = 4 * (B_pad * dim_state + dim_state * dim_hidden
                          + dim_hidden * n_pad + 2 * bias_w + B_pad * n_pad)

    mean_pad = pl.pallas_call(
        _policy_mlp_kernel,
        out_shape=jax.ShapeDtypeStruct((B_pad, n_pad), jnp.float32),
        grid_spec=pltpu.PrefetchScalarGridSpec(
            num_scalar_prefetch=0,
            grid=grid,
            in_specs=[
                pl.BlockSpec((TB, dim_state), lambda i: (i, 0)),      # state tile (streamed)
                pl.BlockSpec((dim_state, dim_hidden), lambda i: (0, 0)),  # W1 (resident)
                pl.BlockSpec((dim_hidden, n_pad), lambda i: (0, 0)),      # W2 padded (resident)
                pl.BlockSpec((2, bias_w), lambda i: (0, 0)),              # packed b1/b2 (resident)
            ],
            out_specs=pl.BlockSpec((TB, n_pad), lambda i: (i, 0)),    # lane-dense mean slab
        ),
        compiler_params=pltpu.CompilerParams(
            dimension_semantics=("parallel",),
        ),
        cost_estimate=pl.CostEstimate(
            flops=flops, transcendentals=0, bytes_accessed=bytes_accessed),
    )(x, w1.astype(jnp.float32), w2p, bias_pack)

    mean = mean_pad[:B, :dim_action]

    # std is state-independent: computed once here, not in the kernel.
    std = jnp.broadcast_to(jnp.exp(log_std.reshape(-1).astype(jnp.float32)),
                           (B, dim_action))
    return mean, std


def init_params(key, dim_state, dim_action, dim_hidden):
    # Deterministic synthetic init (mimics init_weight's small-scale gaussian init).
    k1, k2 = jax.random.split(key, 2)
    w1 = jax.random.normal(k1, (dim_state, dim_hidden), jnp.float32) * (1.0 / jnp.sqrt(dim_state))
    b1 = jnp.zeros((1, dim_hidden), jnp.float32)
    w2 = jax.random.normal(k2, (dim_hidden, dim_action), jnp.float32) * (1.0 / jnp.sqrt(dim_hidden))
    b2 = jnp.zeros((1, dim_action), jnp.float32)
    log_std = jnp.zeros((1, dim_action), jnp.float32)  # learnable log_std of the gaussian head
    return (w1, b1, w2, b2, log_std)


if __name__ == "__main__":
    # Small shapes consistent with an MLP policy: batch=8, dim_state=32, dim_hidden=128, dim_action=8.
    B, dim_state, dim_hidden, dim_action = 8, 32, 128, 8

    key = jax.random.PRNGKey(0)
    k_params, k_state = jax.random.split(key)
    params = init_params(k_params, dim_state, dim_action, dim_hidden)
    state = jax.random.normal(k_state, (B, dim_state), jnp.float32)

    mean, std = policy_network_forward(state, params)
    jax.block_until_ready((mean, std))

    # Pure-JAX reference check of the hot path.
    w1, b1, w2, b2, log_std = params
    h_ref = jnp.maximum(state @ w1 + b1, 0.0)
    mean_ref = h_ref @ w2 + b2
    std_ref = jnp.broadcast_to(jnp.exp(log_std), (B, dim_action))
    assert jnp.allclose(mean, mean_ref, atol=1e-4, rtol=1e-4)
    assert jnp.allclose(std, std_ref, atol=1e-6, rtol=1e-6)

    # TODO(synk): the torch module returns a torch.distributions.Normal object; rsample /
    # log_prob / entropy / kl are thin closed-form functions of (mean, std) left to the caller.
    print("KERNEL_OK")
</pallas_src>

<mosaic_0001>
module attributes {stable_mosaic.version = 11 : i64} {
  func.func @_policy_mlp_kernel(%arg0: i32, %arg1: memref<8x32xf32, #tpu.memory_space<vmem>>, %arg2: memref<32x128xf32, #tpu.memory_space<vmem>>, %arg3: memref<128x128xf32, #tpu.memory_space<vmem>>, %arg4: memref<2x128xf32, #tpu.memory_space<vmem>>, %arg5: memref<8x128xf32, #tpu.memory_space<vmem>>) attributes {dimension_semantics = [#tpu.dimension_semantics<parallel>], iteration_bounds = array<i64: 1>, scalar_prefetch = 0 : i64, scratch_operands = 0 : i64, tpu.core_type = #tpu.core_type<tc>, window_params = [{transform_indices = @transform_0, window_bounds = array<i64: 8, 32>}, {pipeline_mode = #tpu.pipeline_mode<synchronous>, transform_indices = @transform_1, window_bounds = array<i64: 32, 128>}, {pipeline_mode = #tpu.pipeline_mode<synchronous>, transform_indices = @transform_2, window_bounds = array<i64: 128, 128>}, {pipeline_mode = #tpu.pipeline_mode<synchronous>, transform_indices = @transform_3, window_bounds = array<i64: 2, 128>}, {transform_indices = @transform_4, window_bounds = array<i64: 8, 128>}]} {
    %c0 = arith.constant 0 : index
    %c0_0 = arith.constant 0 : index
    %0 = vector.load %arg1[%c0, %c0_0] : memref<8x32xf32, #tpu.memory_space<vmem>>, vector<8x32xf32>
    %c0_1 = arith.constant 0 : index
    %c0_2 = arith.constant 0 : index
    %1 = vector.load %arg2[%c0_1, %c0_2] : memref<32x128xf32, #tpu.memory_space<vmem>>, vector<32x128xf32>
    %cst = arith.constant dense<0.000000e+00> : vector<8x128xf32>
    %2 = tpu.matmul %0, %1, %cst {dimension_numbers = #tpu.dot_dimension_numbers<[1], [0], [0], [1], [0, 0, 1, 1], [], []>} : vector<8x32xf32>, vector<32x128xf32>, vector<8x128xf32> -> vector<8x128xf32>
    %c0_3 = arith.constant 0 : index
    %c0_4 = arith.constant 0 : index
    %3 = vector.load %arg4[%c0_3, %c0_4] : memref<2x128xf32, #tpu.memory_space<vmem>>, vector<1x128xf32>
    %4 = vector.broadcast %3 : vector<1x128xf32> to vector<8x128xf32>
    %5 = arith.addf %2, %4 : vector<8x128xf32>
    %cst_5 = arith.constant 0.000000e+00 : f32
    %6 = vector.broadcast %cst_5 : f32 to vector<8x128xf32>
    %7 = arith.maximumf %5, %6 : vector<8x128xf32>
    %c0_6 = arith.constant 0 : index
    %c0_7 = arith.constant 0 : index
    %8 = vector.load %arg3[%c0_6, %c0_7] : memref<128x128xf32, #tpu.memory_space<vmem>>, vector<128x128xf32>
    %cst_8 = arith.constant dense<0.000000e+00> : vector<8x128xf32>
    %9 = tpu.matmul %7, %8, %cst_8 {dimension_numbers = #tpu.dot_dimension_numbers<[1], [0], [0], [1], [0, 0, 1, 1], [], []>} : vector<8x128xf32>, vector<128x128xf32>, vector<8x128xf32> -> vector<8x128xf32>
    %c1 = arith.constant 1 : index
    %c0_9 = arith.constant 0 : index
    %10 = vector.load %arg4[%c1, %c0_9] : memref<2x128xf32, #tpu.memory_space<vmem>>, vector<1x128xf32>
    %11 = vector.broadcast %10 : vector<1x128xf32> to vector<8x128xf32>
    %12 = arith.addf %9, %11 : vector<8x128xf32>
    %c0_10 = arith.constant 0 : index
    %c0_11 = arith.constant 0 : index
    %13 = vector.load %arg5[%c0_10, %c0_11] : memref<8x128xf32, #tpu.memory_space<vmem>>, vector<8x128xf32>
    tpu.vector_store %arg5[%c0_10, %c0_11], %12 {strides = array<i32>} : memref<8x128xf32, #tpu.memory_space<vmem>>, vector<8x128xf32>,
    return
  }
  func.func @transform_0(%arg0: i32) -> (i32, i32) {
    %c0_i32 = arith.constant 0 : i32
    %c0_i32_0 = arith.constant 0 : i32
    return %arg0, %c0_i32 : i32, i32
  }
  func.func @transform_1(%arg0: i32) -> (i32, i32) {
    %c0_i32 = arith.constant 0 : i32
    %c0_i32_0 = arith.constant 0 : i32
    %c0_i32_1 = arith.constant 0 : i32
    return %c0_i32, %c0_i32_0 : i32, i32
  }
  func.func @transform_2(%arg0: i32) -> (i32, i32) {
    %c0_i32 = arith.constant 0 : i32
    %c0_i32_0 = arith.constant 0 : i32
    %c0_i32_1 = arith.constant 0 : i32
    return %c0_i32, %c0_i32_0 : i32, i32
  }
  func.func @transform_3(%arg0: i32) -> (i32, i32) {
    %c0_i32 = arith.constant 0 : i32
    %c0_i32_0 = arith.constant 0 : i32
    %c0_i32_1 = arith.constant 0 : i32
    return %c0_i32, %c0_i32_0 : i32, i32
  }
  func.func @transform_4(%arg0: i32) -> (i32, i32) {
    %c0_i32 = arith.constant 0 : i32
    %c0_i32_0 = arith.constant 0 : i32
    return %arg0, %c0_i32 : i32, i32
  }
}

</mosaic_0001>

<llo_original>
// kernel: tpu_custom_call.1
$region0: #{tpu_custom_call.1}
  #allocation0 [shape = 'u32[]', space=smem, size = 0x4, offset = 0x4, fixed_abs, tag = 'smem constant byte address 0x4 - core index']
  #allocation1 [shape = 'u32[144,128]{1,0:T(1,128)}', space=vmem, size = 0x12000, scoped, tag = 'internal scratch']
  %s0 = inlined_call_operand.hbm [shape: f32[8,32], index: 0, kind: input, shape index: {}]
  %s1 = inlined_call_operand.hbm [shape: f32[32,128], index: 1, kind: input, shape index: {}]
  %s2 = inlined_call_operand.hbm [shape: f32[128,128], index: 2, kind: input, shape index: {}]
  %s3 = inlined_call_operand.vmem [shape: f32[2,128], index: 3, kind: input, shape index: {}]
  %s4 = inlined_call_operand.hbm [shape: f32[8,128], index: 4, kind: output, shape index: {}]
  %s5 = sld [smem:[#allocation0]]
  $region38: #{tpu_custom_call.1} parent=0
    _
  %s7 = ssub.s32 1, %s5
  %s8 = scalar_select 0, %s7, %s5
  $region1: #{tpu_custom_call.1} parent=0
    #allocation2 [shape = 'u8[4096]{0}', space=vmem, size = 0x1000, scoped, tag = 'input window, operand 0, single buffered']
    #allocation3 [shape = 's32[1]{0}', space=sflag, size = 0x4, scoped, tag = 'scoped memory for tpu_custom_call.1']
    #allocation4 [shape = 's32[1]{0}', space=sflag, size = 0x4, scoped, tag = 'scoped memory for tpu_custom_call.1']
    #allocation5 [shape = 'u8[16384]{0}', space=vmem, size = 0x4000, scoped, tag = 'input window, operand 1, single buffered']
    #allocation6 [shape = 's32[1]{0}', space=sflag, size = 0x4, scoped, tag = 'scoped memory for tpu_custom_call.1']
    #allocation7 [shape = 'u8[65536]{0}', space=vmem, size = 0x10000, scoped, tag = 'input window, operand 2, single buffered']
    #allocation8 [shape = 'u8[4096]{0}', space=vmem, size = 0x1000, scoped, tag = 'output window, operand 0, single buffered']
    %9 = vsyncpa [#allocation3], 0
    %10 = vsyncpa [#allocation6], 0
    %11 = vsyncpa [#allocation4], 0
    // Predicated region
    $region2: #{tpu_custom_call.1} parent=1 // pred_check
      _
    $region3: #{tpu_custom_call.1} parent=1 // pred_check_branch
      %13 = sbr.rel (0) target = $region5
    $region4: #{tpu_custom_call.1} parent=1 // pred_region
      %s15 = ssub.s32 128, 128
      %16 = vsyncadd [#allocation3], %s15
      %s18 = sshll.u32 [#allocation2], 4
      %s19 = int_to_ptr.vmem [resolvable:$true] %s18
      %21 = dma.hbm_to_vmem [thread:$0]  %s0, 128, %s19, [#allocation3]
    $region5: #{tpu_custom_call.1} parent=1 // pred_fallthru
      _
    // Predicated region
    $region6: #{tpu_custom_call.1} parent=1 // pred_check
      _
    $region7: #{tpu_custom_call.1} parent=1 // pred_check_branch
      %23 = sbr.rel (0) target = $region9
    $region8: #{tpu_custom_call.1} parent=1 // pred_region
      %s25 = ssub.s32 512, 512
      %26 = vsyncadd [#allocation6], %s25
      %s27 = sshll.u32 [#allocation5], 4
      %s28 = int_to_ptr.vmem [resolvable:$true] %s27
      %33 = dma.hbm_to_vmem [thread:$0]  %s1, 512, %s28, [#allocation6], 128, 128, 8
    $region9: #{tpu_custom_call.1} parent=1 // pred_fallthru
      _
    // Predicated region
    $region10: #{tpu_custom_call.1} parent=1 // pred_check
      _
    $region11: #{tpu_custom_call.1} parent=1 // pred_check_branch
      %35 = sbr.rel (0) target = $region13
    $region12: #{tpu_custom_call.1} parent=1 // pred_region
      %s37 = ssub.s32 2048, 2048
      %38 = vsyncadd [#allocation6], %s37
      %s39 = sshll.u32 [#allocation7], 4
      %s40 = int_to_ptr.vmem [resolvable:$true] %s39
      %45 = dma.hbm_to_vmem [thread:$0]  %s2, 2048, %s40, [#allocation6], 128, 128, 8
    $region13: #{tpu_custom_call.1} parent=1 // pred_fallthru
      _
    // Predicated region
    $region14: #{tpu_custom_call.1} parent=1 // pred_check
      _
    $region15: #{tpu_custom_call.1} parent=1 // pred_check_branch
      %47 = sbr.rel (0) target = $region17
    $region16: #{tpu_custom_call.1} parent=1 // pred_region
      _
    $region17: #{tpu_custom_call.1} parent=1 // pred_fallthru
      _
    // Predicated region
    $region18: #{tpu_custom_call.1} parent=1 // pred_check
      _
    $region19: #{tpu_custom_call.1} parent=1 // pred_check_branch
      %49 = sbr.rel (0) target = $region21
    $region20: #{tpu_custom_call.1} parent=1 // pred_region
      %50 = dma.done [#allocation3], 128
    $region21: #{tpu_custom_call.1} parent=1 // pred_fallthru
      _
    // Predicated region
    $region22: #{tpu_custom_call.1} parent=1 // pred_check
      _
    $region23: #{tpu_custom_call.1} parent=1 // pred_check_branch
      %52 = sbr.rel (0) target = $region25
    $region24: #{tpu_custom_call.1} parent=1 // pred_region
      %53 = dma.done [#allocation6], 512
    $region25: #{tpu_custom_call.1} parent=1 // pred_fallthru
      _
    // Predicated region
    $region26: #{tpu_custom_call.1} parent=1 // pred_check
      _
    $region27: #{tpu_custom_call.1} parent=1 // pred_check_branch
      %55 = sbr.rel (0) target = $region29
    $region28: #{tpu_custom_call.1} parent=1 // pred_region
      %56 = dma.done [#allocation6], 2048
    $region29: #{tpu_custom_call.1} parent=1 // pred_fallthru
      _
    %v57 = vld [vmem:[#allocation2] sm:$0xff]
    %v58 = vld [vmem:[#allocation5] sm:$0xff]
    %v59 = vld [vmem:[#allocation5 + $0x8] sm:$0xff]
    %v60 = vld [vmem:[#allocation5 + $0x10] sm:$0xff]
    %v61 = vld [vmem:[#allocation5 + $0x18] sm:$0xff]
    %v62 = vld [vmem:[%s3] sm:$0x1]
    %v63 = vlaneseq
    %v64 = vshrl.u32 %v63, 7
    %v65 = vsub.s32 0, %v64
    %v66 = vrot.slane %v62, %v65
    %vm67 = vcmask 261120
    %v69 = vsel %vm67, %v57, 0
    %71 = vmatprep.subr.mxu0 0.0
    %72 = vmatpush1.msra.mxu0 0.0
    %73 = vmatprep.subr.mxu0 0.0
    %74 = vmatpush1.msra.mxu0 0.0
    %75 = vmatprep.subr.mxu0 0.0
    %76 = vmatpush1.msra.mxu0 0.0
    %77 = vmatprep.subr.mxu0 0.0
    %78 = vmatpush1.msra.mxu0 0.0
    %79 = vmatprep.subr.mxu0 0.0
    %80 = vmatpush1.msra.mxu0 0.0
    %81 = vmatprep.subr.mxu0 0.0
    %82 = vmatpush1.msra.mxu0 0.0
    %83 = vmatprep.subr.mxu0 0.0
    %84 = vmatpush1.msra.mxu0 0.0
    %85 = vmatprep.subr.mxu0 0.0
    %86 = vmatpush1.msra.mxu0 0.0
    %87 = vmatprep.subr.mxu0 0.0
    %88 = vmatpush1.msra.mxu0 0.0
    %89 = vmatprep.subr.mxu0 0.0
    %90 = vmatpush1.msra.mxu0 0.0
    %91 = vmatprep.subr.mxu0 0.0
    %92 = vmatpush1.msra.mxu0 0.0
    %93 = vmatprep.subr.mxu0 0.0
    %94 = vmatpush1.msra.mxu0 0.0
    %95 = vmatprep.subr.mxu0 0.0
    %96 = vmatpush1.msra.mxu0 %v61
    %97 = vmatprep.subr.mxu0 0.0
    %98 = vmatpush1.msra.mxu0 %v60
    %99 = vmatprep.subr.mxu0 0.0
    %100 = vmatpush1.msra.mxu0 %v59
    %101 = vmatprep.subr.mxu0 0.0
    %102 = vmatpush1.msra.mxu0 %v58
    %103 = vmatprep.subr.mxu0 0.0
    %104 = vmatpush2.msra.mxu0 0.0
    %105 = vmatprep.subr.mxu0 0.0
    %106 = vmatpush2.msra.mxu0 0.0
    %107 = vmatprep.subr.mxu0 0.0
    %108 = vmatpush2.msra.mxu0 0.0
    %109 = vmatprep.subr.mxu0 0.0
    %110 = vmatpush2.msra.mxu0 0.0
    %111 = vmatprep.subr.mxu0 0.0
    %112 = vmatpush2.msra.mxu0 0.0
    %113 = vmatprep.subr.mxu0 0.0
    %114 = vmatpush2.msra.mxu0 0.0
    %115 = vmatprep.subr.mxu0 0.0
    %116 = vmatpush2.msra.mxu0 0.0
    %117 = vmatprep.subr.mxu0 0.0
    %118 = vmatpush2.msra.mxu0 0.0
    %119 = vmatprep.subr.mxu0 0.0
    %120 = vmatpush2.msra.mxu0 0.0
    %121 = vmatprep.subr.mxu0 0.0
    %122 = vmatpush2.msra.mxu0 0.0
    %123 = vmatprep.subr.mxu0 0.0
    %124 = vmatpush2.msra.mxu0 0.0
    %125 = vmatprep.subr.mxu0 0.0
    %126 = vmatpush2.msra.mxu0 0.0
    %127 = vmatprep.subr.mxu0 0.0
    %128 = vmatpush2.msra.mxu0 0.0
    %129 = vmatprep.subr.mxu0 0.0
    %130 = vmatpush2.msra.mxu0 0.0
    %131 = vmatprep.subr.mxu0 0.0
    %132 = vmatpush2.msra.mxu0 0.0
    %133 = vmatprep.subr.mxu0 0.0
    %134 = vmatpush2.msra.mxu0 0.0
    %135 = vmatprep.mubr.f32.mxu0 0.0
    %136 = vmatmul.mubr.f32.gmra.mxu0 %v69
    %v137 = vpop.f32.mrf.mxu0
    %v138 = vadd.f32 %v66, %v137
    %v139 = vpop.f32.mrf.mxu0
    %140 = vdwg.mxu0
    %v141 = vmax.f32 %v138, 0.0
    %v142 = vld [vmem:[#allocation7] sm:$0xff]
    %v143 = vld [vmem:[#allocation7 + $0x8] sm:$0xff]
    %v144 = vld [vmem:[#allocation7 + $0x10] sm:$0xff]
    %v145 = vld [vmem:[#allocation7 + $0x18] sm:$0xff]
    %v146 = vld [vmem:[#allocation7 + $0x20] sm:$0xff]
    %v147 = vld [vmem:[#allocation7 + $0x28] sm:$0xff]
    %v148 = vld [vmem:[#allocation7 + $0x30] sm:$0xff]
    %v149 = vld [vmem:[#allocation7 + $0x38] sm:$0xff]
    %v150 = vld [vmem:[#allocation7 + $0x40] sm:$0xff]
    %v151 = vld [vmem:[#allocation7 + $0x48] sm:$0xff]
    %v152 = vld [vmem:[#allocation7 + $0x50] sm:$0xff]
    %v153 = vld [vmem:[#allocation7 + $0x58] sm:$0xff]
    %v154 = vld [vmem:[#allocation7 + $0x60] sm:$0xff]
    %v155 = vld [vmem:[#allocation7 + $0x68] sm:$0xff]
    %v156 = vld [vmem:[#allocation7 + $0x70] sm:$0xff]
    %v157 = vld [vmem:[#allocation7 + $0x78] sm:$0xff]
    %v158 = vld [vmem:[%s3 + $0x1] sm:$0x1]
    %v159 = vlaneseq
    %v160 = vshrl.u32 %v159, 7
    %v161 = vsub.s32 0, %v160
    %v162 = vrot.slane %v158, %v161
    %163 = vmatprep.subr.mxu0 0.0
    %164 = vmatpush1.msra.mxu0 %v157
    %165 = vmatprep.subr.mxu0 0.0
    %166 = vmatpush1.msra.mxu0 %v156
    %167 = vmatprep.subr.mxu0 0.0
    %168 = vmatpush1.msra.mxu0 %v155
    %169 = vmatprep.subr.mxu0 0.0
    %170 = vmatpush1.msra.mxu0 %v154
    %171 = vmatprep.subr.mxu0 0.0
    %172 = vmatpush1.msra.mxu0 %v153
    %173 = vmatprep.subr.mxu0 0.0
    %174 = vmatpush1.msra.mxu0 %v152
    %175 = vmatprep.subr.mxu0 0.0
    %176 = vmatpush1.msra.mxu0 %v151
    %177 = vmatprep.subr.mxu0 0.0
    %178 = vmatpush1.msra.mxu0 %v150
    %179 = vmatprep.subr.mxu0 0.0
    %180 = vmatpush1.msra.mxu0 %v149
    %181 = vmatprep.subr.mxu0 0.0
    %182 = vmatpush1.msra.mxu0 %v148
    %183 = vmatprep.subr.mxu0 0.0
    %184 = vmatpush1.msra.mxu0 %v147
    %185 = vmatprep.subr.mxu0 0.0
    %186 = vmatpush1.msra.mxu0 %v146
    %187 = vmatprep.subr.mxu0 0.0
    %188 = vmatpush1.msra.mxu0 %v145
    %189 = vmatprep.subr.mxu0 0.0
    %190 = vmatpush1.msra.mxu0 %v144
    %191 = vmatprep.subr.mxu0 0.0
    %192 = vmatpush1.msra.mxu0 %v143
    %193 = vmatprep.subr.mxu0 0.0
    %194 = vmatpush1.msra.mxu0 %v142
    %195 = vmatprep.subr.mxu0 0.0
    %196 = vmatpush2.msra.mxu0 0.0
    %197 = vmatprep.subr.mxu0 0.0
    %198 = vmatpush2.msra.mxu0 0.0
    %199 = vmatprep.subr.mxu0 0.0
    %200 = vmatpush2.msra.mxu0 0.0
    %201 = vmatprep.subr.mxu0 0.0
    %202 = vmatpush2.msra.mxu0 0.0
    %203 = vmatprep.subr.mxu0 0.0
    %204 = vmatpush2.msra.mxu0 0.0
    %205 = vmatprep.subr.mxu0 0.0
    %206 = vmatpush2.msra.mxu0 0.0
    %207 = vmatprep.subr.mxu0 0.0
    %208 = vmatpush2.msra.mxu0 0.0
    %209 = vmatprep.subr.mxu0 0.0
    %210 = vmatpush2.msra.mxu0 0.0
    %211 = vmatprep.subr.mxu0 0.0
    %212 = vmatpush2.msra.mxu0 0.0
    %213 = vmatprep.subr.mxu0 0.0
    %214 = vmatpush2.msra.mxu0 0.0
    %215 = vmatprep.subr.mxu0 0.0
    %216 = vmatpush2.msra.mxu0 0.0
    %217 = vmatprep.subr.mxu0 0.0
    %218 = vmatpush2.msra.mxu0 0.0
    %219 = vmatprep.subr.mxu0 0.0
    %220 = vmatpush2.msra.mxu0 0.0
    %221 = vmatprep.subr.mxu0 0.0
    %222 = vmatpush2.msra.mxu0 0.0
    %223 = vmatprep.subr.mxu0 0.0
    %224 = vmatpush2.msra.mxu0 0.0
    %225 = vmatprep.subr.mxu0 0.0
    %226 = vmatpush2.msra.mxu0 0.0
    %227 = vmatprep.mubr.f32.mxu0 0.0
    %228 = vmatmul.mubr.f32.gmra.mxu0 %v141
    %v229 = vpop.f32.mrf.mxu0
    %v230 = vadd.f32 %v162, %v229
    %v231 = vpop.f32.mrf.mxu0
    %232 = vdwg.mxu0
    %233 = vst [vmem:[#allocation8] sm:$0xff] %v230
    // Predicated region
    $region30: #{tpu_custom_call.1} parent=1 // pred_check
      _
    $region31: #{tpu_custom_call.1} parent=1 // pred_check_branch
      %235 = sbr.rel (0) target = $region33
    $region32: #{tpu_custom_call.1} parent=1 // pred_region
      %s237 = ssub.s32 128, 128
      %238 = vsyncadd [#allocation4], %s237
      %s240 = sshll.u32 [#allocation8], 4
      %s241 = int_to_ptr.vmem [resolvable:$true] %s240
      %243 = dma.vmem_to_hbm [thread:$0]  %s241, 128, %s4, [#allocation4]
    $region33: #{tpu_custom_call.1} parent=1 // pred_fallthru
      _
    // Predicated region
    $region34: #{tpu_custom_call.1} parent=1 // pred_check
      _
    $region35: #{tpu_custom_call.1} parent=1 // pred_check_branch
      %245 = sbr.rel (0) target = $region37
    $region36: #{tpu_custom_call.1} parent=1 // pred_region
      %246 = dma.done [#allocation4], 128
    $region37: #{tpu_custom_call.1} parent=1 // pred_fallthru
      _
    %247 = vsyncpa [#allocation3], 1
    %248 = vsyncpa [#allocation6], 1
    %249 = vsyncpa [#allocation4], 1

</llo_original>
